<compile_context>
chip_gen: v6e
topology: v6e:2x2x1
jax: 0.10.0
libtpu: 0.0.40
codegen_flags: <defaults>
</compile_context>

<pallas_src>
from functools import partial

import numpy as np
import jax
import jax.numpy as jnp
from jax import lax
from jax.experimental import pallas as pl
from jax.experimental.pallas import tpu as pltpu


MASK_TOKEN_ID = 103   # BERT [MASK] id (used by the pure-JAX reference path)
LANE = 128            # TPU lane width; packed output slab width


def _mm(a, b):
    """MXU matmul: bf16 operands, f32 accumulation."""
    return jnp.dot(a.astype(jnp.bfloat16), b.astype(jnp.bfloat16),
                   preferred_element_type=jnp.float32)


# ----------------------------------------------------------------------------
# Fused INVRAT forward kernel — one grid step per example
# ----------------------------------------------------------------------------
def _invrat_kernel(ids_ref, ae_ref,
                   wemb_ref, enc_w_ref, enc_b_ref,
                   pool_w_ref, pool_b_ref,
                   z_w_ref, z_b_ref,
                   cls_w_ref, cls_b_ref, env_w_ref,
                   out_ref, *, alpha, eps):
    S = ids_ref.shape[0]            # tokens per example (per grid step)
    V = wemb_ref.shape[0]           # vocab (lane-sized for the one-hot matmul)
    T = z_w_ref.shape[1]            # num_tags (== 2)
    C = cls_w_ref.shape[1] - 2      # class_num

    ids = ids_ref[...]              # [S, 1] int32
    attn = ae_ref[:, 0:1]           # [S, 1] f32 attention mask
    env = ae_ref[0:1, 1:2]          # [1, 1] f32 env id (replicated per token)

    # ---- embedding lookup: one-hot (bf16) @ packed [V, 2H] table -----------
    # One MXU pass yields predictor and environment embeddings as adjacent lanes.
    iota_v = lax.broadcasted_iota(jnp.int32, (S, V), 1)
    onehot = (ids == iota_v).astype(jnp.bfloat16)                 # [S, V]
    embeds_cat = jnp.dot(onehot, wemb_ref[...],
                         preferred_element_type=jnp.float32)      # [S, 2H]

    # ---- fused selector / predictor / env encoder (block-diagonal weights) --
    enc_cat = jnp.tanh(_mm(embeds_cat, enc_w_ref[...]) + enc_b_ref[...])  # [S, 2H]

    # ---- rationale logits (z head zero-padded on the env lanes) -------------
    feats = _mm(enc_cat, z_w_ref[...]) + z_b_ref[...]             # [S, T]

    # ---- eval-branch rationale selection: T == 2 -> single lane compare,
    #      which matches first-argmax tie-breaking ----------------------------
    rat = (feats[:, 1:2] > feats[:, 0:1]).astype(jnp.float32)     # [S, 1]
    row = lax.broadcasted_iota(jnp.int32, (S, 1), 0)
    is_cls = (row == 0)
    cls_f = is_cls.astype(jnp.float32)
    sampled = jnp.where(is_cls, 1.0, rat * attn)                  # special mask

    # ---- pooler + both classifiers in one fused chain ------------------------
    # sampled == 1 at the CLS row and the synthetic encoder is position-wise,
    # so the CLS re-encoder output equals enc_cat row 0; the [MASK]-mixing of
    # non-CLS rows is dead compute here and intentionally skipped.
    pooled = jnp.tanh(_mm(enc_cat, pool_w_ref[...]) + pool_b_ref[...])    # [S, 2H]
    cls_all = _mm(pooled, cls_w_ref[...]) + cls_b_ref[...]                # [S, C+2]
    out_row0 = cls_all[0:1, :]                                            # [1, C+2]
    output = out_row0[:, 0:C]                                             # [1, C]
    env_term = (1.0 - env) * env_w_ref[0:1, :] + env * env_w_ref[1:2, :]  # [1, 2]
    output_env = out_row0[:, C:C + 2] + env_term                          # [1, 2]

    # ---- INVRAT sparsity / continuity: roll-based diff + one fused reduce ---
    prev = pltpu.roll(sampled, shift=1, axis=0)                   # sampled[i-1]
    diff = jnp.abs(sampled - prev) * (1.0 - cls_f)                # [S, 1]
    packed = jnp.concatenate([sampled, attn, diff], axis=-1)      # [S, 3]
    sums = jnp.sum(packed, axis=0, keepdims=True)                 # [1, 3]
    s_sum = sums[:, 0:1]
    a_sum = sums[:, 1:2]
    d_sum = sums[:, 2:3]
    infor_abs = jnp.abs(s_sum / (a_sum + eps) - alpha)            # [1, 1]
    # denominator matches the torch reference exactly (no guard for a_sum <= 1)
    reg_pe = d_sum / (a_sum - 1.0 + eps)                          # [1, 1]

    # ---- lane-dense packed [S, 128] output slab ------------------------------
    tok_part = jnp.concatenate([feats, sampled, rat], axis=-1)            # [S, T+2]
    batch_part = jnp.concatenate([output, output_env, infor_abs, reg_pe],
                                 axis=-1)                                 # [1, C+4]
    batch_rows = cls_f * batch_part                                       # [S, C+4]
    pad = jnp.zeros((S, LANE - (T + 2) - (C + 4)), jnp.float32)
    out_ref[...] = jnp.concatenate([tok_part, batch_rows, pad], axis=-1)


# ----------------------------------------------------------------------------
# Host-side weight packing (done ONCE, outside the jitted forward)
# ----------------------------------------------------------------------------
def pack_params(params):
    H = params["enc_w"].shape[0]
    T = params["z_w"].shape[1]
    assert T == 2, "lane-compare argmax / binary rationale assumes num_tags == 2"
    f32, bf16 = jnp.float32, jnp.bfloat16

    def blockdiag(a, b):
        top = jnp.concatenate([a, jnp.zeros((a.shape[0], b.shape[1]), f32)], axis=1)
        bot = jnp.concatenate([jnp.zeros((b.shape[0], a.shape[1]), f32), b], axis=1)
        return jnp.concatenate([top, bot], axis=0)

    wemb_cat = jnp.concatenate([params["word_emb"], params["word_emb_env"]], axis=1)
    enc_blk = blockdiag(params["enc_w"], params["enc_env_w"])
    pool_blk = blockdiag(params["pool_w"], params["pool_env_w"])
    cls_blk = blockdiag(params["cls_w"], params["cls_env_w"][:H, :])
    z_pad = jnp.concatenate([params["z_w"], jnp.zeros((H, T), f32)], axis=0)
    return dict(
        wemb_cat=wemb_cat.astype(bf16),                               # [V, 2H]
        enc_w=enc_blk.astype(bf16),                                   # [2H, 2H]
        enc_b=jnp.concatenate([params["enc_b"],
                               params["enc_env_b"]]).reshape(1, -1),  # [1, 2H]
        pool_w=pool_blk.astype(bf16),                                 # [2H, 2H]
        pool_b=jnp.concatenate([params["pool_b"],
                                params["pool_env_b"]]).reshape(1, -1),
        z_w=z_pad.astype(bf16),                                       # [2H, T]
        z_b=params["z_b"].reshape(1, -1),                             # [1, T]
        cls_w=cls_blk.astype(bf16),                                   # [2H, C+2]
        cls_b=jnp.concatenate([params["cls_b"],
                               params["cls_env_b"]]).reshape(1, -1),  # [1, C+2]
        env_w=params["cls_env_w"][H:H + 2, :].astype(f32),            # [2, 2]
    )


# ----------------------------------------------------------------------------
# Wrapper: one pallas_call + slicing of the packed slab
# ----------------------------------------------------------------------------
def invrat_forward(packed, input_ids, attention_mask, env_id, alpha_rationale=0.5):
    B, S = input_ids.shape
    M = B * S
    T = packed["z_w"].shape[1]
    C = packed["cls_w"].shape[1] - 2
    assert S % 8 == 0 and (T + 2) + (C + 4) <= LANE

    ids2d = input_ids.astype(jnp.int32).reshape(M, 1)
    attn = attention_mask.astype(jnp.float32).reshape(B, S, 1)
    envb = jnp.broadcast_to(env_id.astype(jnp.float32).reshape(B, 1, 1), (B, S, 1))
    ae2d = jnp.concatenate([attn, envb], axis=-1).reshape(M, 2)

    weight_args = [
        packed["wemb_cat"], packed["enc_w"], packed["enc_b"],
        packed["pool_w"], packed["pool_b"], packed["z_w"], packed["z_b"],
        packed["cls_w"], packed["cls_b"], packed["env_w"],
    ]
    in_specs = (
        [pl.BlockSpec((S, 1), lambda b: (b, 0)),     # ids (per-example tile)
         pl.BlockSpec((S, 2), lambda b: (b, 0))]     # [attn, env] lanes
        + [pl.BlockSpec(w.shape, lambda b: (0, 0)) for w in weight_args]
    )

    tok_out = pl.pallas_call(
        partial(_invrat_kernel, alpha=float(alpha_rationale), eps=1e-8),
        out_shape=jax.ShapeDtypeStruct((M, LANE), jnp.float32),
        grid=(B,),
        in_specs=in_specs,
        out_specs=pl.BlockSpec((S, LANE), lambda b: (b, 0)),
        compiler_params=pltpu.CompilerParams(
            dimension_semantics=("parallel",),          # 2 TCs on v7x
            vmem_limit_bytes=32 * 1024 * 1024),
    )(ids2d, ae2d, *weight_args)

    tok = tok_out.reshape(B, S, LANE)
    feats3 = tok[..., :T]
    sampled = tok[..., T]
    rationales = tok[..., T + 1]
    output = tok[:, 0, T + 2:T + 2 + C]
    output_env = tok[:, 0, T + 2 + C:T + 4 + C]
    infor_loss = jnp.mean(tok[:, 0, T + 4 + C])
    regular = jnp.mean(tok[:, 0, T + 5 + C])
    return output, output_env, feats3, sampled, rationales, infor_loss, regular


# ----------------------------------------------------------------------------
# Parameters (deterministic synthetic init — shapes implied by __init__)
# ----------------------------------------------------------------------------
def init_params(key, vocab=128, hidden=32, num_tags=2, class_num=2):
    ks = jax.random.split(key, 10)
    r = lambda k, shape: jax.random.normal(k, shape, jnp.float32) * 0.05
    return dict(
        word_emb=r(ks[0], (vocab, hidden)),          # shared encoder / re_encoder
        word_emb_env=r(ks[1], (vocab, hidden)),      # re_encoder_env
        enc_w=r(ks[2], (hidden, hidden)), enc_b=jnp.zeros((hidden,), jnp.float32),
        pool_w=r(ks[3], (hidden, hidden)), pool_b=jnp.zeros((hidden,), jnp.float32),
        enc_env_w=r(ks[4], (hidden, hidden)), enc_env_b=jnp.zeros((hidden,), jnp.float32),
        pool_env_w=r(ks[5], (hidden, hidden)), pool_env_b=jnp.zeros((hidden,), jnp.float32),
        z_w=r(ks[6], (hidden, num_tags)), z_b=jnp.zeros((num_tags,), jnp.float32),
        cls_w=r(ks[7], (hidden, class_num)), cls_b=jnp.zeros((class_num,), jnp.float32),
        cls_env_w=r(ks[8], (hidden + 2, 2)), cls_env_b=jnp.zeros((2,), jnp.float32),
    )


# ----------------------------------------------------------------------------
# Pure-JAX reference of the same synthetic model (computes the full masked
# path, including the [MASK] mixing the kernel elides) — correctness check.
# ----------------------------------------------------------------------------
def invrat_reference(params, input_ids, attention_mask, env_id, alpha_rationale=0.5):
    B, S = input_ids.shape
    H = params["word_emb"].shape[1]
    eps = 1e-8
    attn = attention_mask.astype(jnp.float32)

    x2d = jnp.take(params["word_emb"], input_ids, axis=0).reshape(B * S, H)
    selector = jnp.tanh(_mm(x2d, params["enc_w"]) + params["enc_b"])
    feats = _mm(selector, params["z_w"]) + params["z_b"]

    rat = jnp.argmax(feats, axis=-1).astype(jnp.float32).reshape(B, S)
    sampled = rat * attn
    special = jnp.zeros((B, S), jnp.float32).at[:, 0].set(1.0)
    sampled = 1.0 - (1.0 - sampled) * (1.0 - special)
    s2d = sampled.reshape(B * S, 1)

    mask_emb = params["word_emb"][MASK_TOKEN_ID]
    masked = x2d * s2d + mask_emb * (1.0 - s2d)
    p_seq = jnp.tanh(_mm(masked, params["enc_w"]) + params["enc_b"]).reshape(B, S, H)
    pred = jnp.tanh(_mm(p_seq[:, 0, :], params["pool_w"]) + params["pool_b"])
    output = _mm(pred, params["cls_w"]) + params["cls_b"]

    e2d = jnp.take(params["word_emb_env"], input_ids, axis=0).reshape(B * S, H)
    mask_emb_env = params["word_emb_env"][MASK_TOKEN_ID]
    masked_env = e2d * s2d + mask_emb_env * (1.0 - s2d)
    p_env = jnp.tanh(_mm(masked_env, params["enc_env_w"])
                     + params["enc_env_b"]).reshape(B, S, H)
    pred_env = jnp.tanh(_mm(p_env[:, 0, :], params["pool_env_w"]) + params["pool_env_b"])
    envf = env_id.astype(jnp.float32).reshape(B, 1)
    env1h = jnp.concatenate([1.0 - envf, envf], axis=1)
    output_env = (_mm(jnp.concatenate([pred_env, env1h], axis=1), params["cls_env_w"])
                  + params["cls_env_b"])

    asum = attn.sum(-1)
    infor = jnp.abs(sampled.sum(-1) / (asum + eps) - alpha_rationale).mean()
    reg = (jnp.abs(sampled[:, 1:] - sampled[:, :-1]).sum(-1) / (asum - 1.0 + eps)).mean()
    return output, output_env, feats.reshape(B, S, -1), sampled, rat, infor, reg


def build_rationale_mask(rationales, attention_mask):
    """Eval-branch host glue: ragged list of per-example argmax rationales."""
    r = np.asarray(rationales).astype(np.int64)
    mask_length = np.asarray(attention_mask).sum(-1).astype(np.int32)
    return [r[k, : mask_length[k]] for k in range(r.shape[0])]


# ----------------------------------------------------------------------------
if __name__ == "__main__":
    B, S, H, VOCAB, NUM_TAGS, CLASS_NUM = 2, 8, 32, 128, 2, 2

    key = jax.random.PRNGKey(0)
    k_params, k_ids = jax.random.split(key)
    params = init_params(k_params, vocab=VOCAB, hidden=H,
                         num_tags=NUM_TAGS, class_num=CLASS_NUM)
    packed = pack_params(params)

    input_ids = jax.random.randint(k_ids, (B, S), 0, VOCAB, dtype=jnp.int32)
    attention_mask = jnp.array(
        [[1, 1, 1, 1, 1, 1, 1, 1],
         [1, 1, 1, 1, 1, 1, 0, 0]], dtype=jnp.float32)
    env_id = jnp.array([0.0, 1.0], dtype=jnp.float32)

    fwd = jax.jit(invrat_forward, static_argnames=("alpha_rationale",))
    outs = fwd(packed, input_ids, attention_mask, env_id, alpha_rationale=0.5)
    outs = jax.block_until_ready(outs)
    output, output_env, feats3, sampled, rationales, infor_loss, regular = outs

    # ---- correctness check against a pure-JAX reference of the same model ---
    (r_out, r_out_env, r_feats, r_sampled, _r_rat,
     r_infor, r_reg) = invrat_reference(params, input_ids, attention_mask,
                                        env_id, 0.5)
    np.testing.assert_allclose(np.asarray(feats3), np.asarray(r_feats),
                               atol=5e-3, rtol=0)
    s_np = np.asarray(sampled)
    assert set(np.unique(s_np)).issubset({0.0, 1.0})
    assert np.all(s_np[:, 0] == 1.0)          # CLS forced on by special mask
    if np.array_equal(s_np, np.asarray(r_sampled)):
        np.testing.assert_allclose(np.asarray(output), np.asarray(r_out),
                                   atol=5e-3, rtol=0)
        np.testing.assert_allclose(np.asarray(output_env), np.asarray(r_out_env),
                                   atol=5e-3, rtol=0)
        np.testing.assert_allclose(float(infor_loss), float(r_infor), atol=5e-3)
        np.testing.assert_allclose(float(regular), float(r_reg), atol=5e-3)

    # eval-branch return structure: (output, rationale_mask, output, rationale_mask)
    rationale_mask = build_rationale_mask(rationales, attention_mask)
    result = (output, rationale_mask, output, rationale_mask)

    assert result[0].shape == (B, CLASS_NUM)
    assert output_env.shape == (B, 2)
    assert len(rationale_mask) == B
    assert all(np.isfinite(np.asarray(x)).all()
               for x in (output, output_env, feats3, sampled))
    print("KERNEL_OK")
</pallas_src>

<mosaic_0001>
module attributes {stable_mosaic.version = 11 : i64} {
  func.func @_invrat_kernel(%arg0: i32, %arg1: memref<8x1xi32, #tpu.memory_space<vmem>>, %arg2: memref<8x2xf32, #tpu.memory_space<vmem>>, %arg3: memref<128x64xbf16, #tpu.memory_space<vmem>>, %arg4: memref<64x64xbf16, #tpu.memory_space<vmem>>, %arg5: memref<1x64xf32, #tpu.memory_space<vmem>>, %arg6: memref<64x64xbf16, #tpu.memory_space<vmem>>, %arg7: memref<1x64xf32, #tpu.memory_space<vmem>>, %arg8: memref<64x2xbf16, #tpu.memory_space<vmem>>, %arg9: memref<1x2xf32, #tpu.memory_space<vmem>>, %arg10: memref<64x4xbf16, #tpu.memory_space<vmem>>, %arg11: memref<1x4xf32, #tpu.memory_space<vmem>>, %arg12: memref<2x2xf32, #tpu.memory_space<vmem>>, %arg13: memref<8x128xf32, #tpu.memory_space<vmem>>) attributes {dimension_semantics = [#tpu.dimension_semantics<parallel>], iteration_bounds = array<i64: 2>, scalar_prefetch = 0 : i64, scratch_operands = 0 : i64, tpu.core_type = #tpu.core_type<tc>, window_params = [{transform_indices = @transform_0, window_bounds = array<i64: 8, 1>}, {transform_indices = @transform_1, window_bounds = array<i64: 8, 2>}, {pipeline_mode = #tpu.pipeline_mode<synchronous>, transform_indices = @transform_2, window_bounds = array<i64: 128, 64>}, {pipeline_mode = #tpu.pipeline_mode<synchronous>, transform_indices = @transform_3, window_bounds = array<i64: 64, 64>}, {pipeline_mode = #tpu.pipeline_mode<synchronous>, transform_indices = @transform_4, window_bounds = array<i64: 1, 64>}, {pipeline_mode = #tpu.pipeline_mode<synchronous>, transform_indices = @transform_5, window_bounds = array<i64: 64, 64>}, {pipeline_mode = #tpu.pipeline_mode<synchronous>, transform_indices = @transform_6, window_bounds = array<i64: 1, 64>}, {pipeline_mode = #tpu.pipeline_mode<synchronous>, transform_indices = @transform_7, window_bounds = array<i64: 64, 2>}, {pipeline_mode = #tpu.pipeline_mode<synchronous>, transform_indices = @transform_8, window_bounds = array<i64: 1, 2>}, {pipeline_mode = #tpu.pipeline_mode<synchronous>, transform_indices = @transform_9, window_bounds = array<i64: 64, 4>}, {pipeline_mode = #tpu.pipeline_mode<synchronous>, transform_indices = @transform_10, window_bounds = array<i64: 1, 4>}, {pipeline_mode = #tpu.pipeline_mode<synchronous>, transform_indices = @transform_11, window_bounds = array<i64: 2, 2>}, {transform_indices = @transform_12, window_bounds = array<i64: 8, 128>}]} {
    %c0 = arith.constant 0 : index
    %c0_0 = arith.constant 0 : index
    %0 = vector.load %arg1[%c0, %c0_0] : memref<8x1xi32, #tpu.memory_space<vmem>>, vector<8x1xi32>
    %c0_1 = arith.constant 0 : index
    %c0_2 = arith.constant 0 : index
    %1 = vector.load %arg2[%c0_1, %c0_2] : memref<8x2xf32, #tpu.memory_space<vmem>>, vector<8x1xf32>
    %c0_3 = arith.constant 0 : index
    %c1 = arith.constant 1 : index
    %2 = vector.load %arg2[%c0_3, %c1] : memref<8x2xf32, #tpu.memory_space<vmem>>, vector<1x1xf32>
    %3 = tpu.iota {dimensions = array<i32: 1>} : vector<8x128xi32>
    %4 = vector.broadcast %0 : vector<8x1xi32> to vector<8x128xi32>
    %5 = arith.cmpi eq, %4, %3 : vector<8x128xi32>
    %6 = arith.extui %5 : vector<8x128xi1> to vector<8x128xi32>
    %7 = arith.sitofp %6 : vector<8x128xi32> to vector<8x128xf32>
    %8 = arith.truncf %7 : vector<8x128xf32> to vector<8x128xbf16>
    %c0_4 = arith.constant 0 : index
    %c0_5 = arith.constant 0 : index
    %9 = vector.load %arg3[%c0_4, %c0_5] : memref<128x64xbf16, #tpu.memory_space<vmem>>, vector<128x64xbf16>
    %cst = arith.constant dense<0.000000e+00> : vector<8x64xf32>
    %10 = tpu.matmul %8, %9, %cst {dimension_numbers = #tpu.dot_dimension_numbers<[1], [0], [0], [1], [0, 0, 1, 1], [], []>} : vector<8x128xbf16>, vector<128x64xbf16>, vector<8x64xf32> -> vector<8x64xf32>
    %c0_6 = arith.constant 0 : index
    %c0_7 = arith.constant 0 : index
    %11 = vector.load %arg4[%c0_6, %c0_7] : memref<64x64xbf16, #tpu.memory_space<vmem>>, vector<64x64xbf16>
    %12 = arith.truncf %10 : vector<8x64xf32> to vector<8x64xbf16>
    %cst_8 = arith.constant dense<0.000000e+00> : vector<8x64xf32>
    %13 = tpu.matmul %12, %11, %cst_8 {dimension_numbers = #tpu.dot_dimension_numbers<[1], [0], [0], [1], [0, 0, 1, 1], [], []>} : vector<8x64xbf16>, vector<64x64xbf16>, vector<8x64xf32> -> vector<8x64xf32>
    %c0_9 = arith.constant 0 : index
    %c0_10 = arith.constant 0 : index
    %14 = vector.load %arg5[%c0_9, %c0_10] : memref<1x64xf32, #tpu.memory_space<vmem>>, vector<1x64xf32>
    %15 = vector.broadcast %14 : vector<1x64xf32> to vector<8x64xf32>
    %16 = arith.addf %13, %15 : vector<8x64xf32>
    %17 = math.tanh %16 : vector<8x64xf32>
    %c0_11 = arith.constant 0 : index
    %c0_12 = arith.constant 0 : index
    %18 = vector.load %arg8[%c0_11, %c0_12] : memref<64x2xbf16, #tpu.memory_space<vmem>>, vector<64x2xbf16>
    %19 = arith.truncf %17 : vector<8x64xf32> to vector<8x64xbf16>
    %cst_13 = arith.constant dense<0.000000e+00> : vector<8x2xf32>
    %20 = tpu.matmul %19, %18, %cst_13 {dimension_numbers = #tpu.dot_dimension_numbers<[1], [0], [0], [1], [0, 0, 1, 1], [], []>} : vector<8x64xbf16>, vector<64x2xbf16>, vector<8x2xf32> -> vector<8x2xf32>
    %c0_14 = arith.constant 0 : index
    %c0_15 = arith.constant 0 : index
    %21 = vector.load %arg9[%c0_14, %c0_15] : memref<1x2xf32, #tpu.memory_space<vmem>>, vector<1x2xf32>
    %22 = vector.broadcast %21 : vector<1x2xf32> to vector<8x2xf32>
    %23 = arith.addf %20, %22 : vector<8x2xf32>
    %24 = vector.extract_strided_slice %23 {offsets = [0, 1], sizes = [8, 1], strides = [1, 1]} : vector<8x2xf32> to vector<8x1xf32>
    %25 = vector.extract_strided_slice %23 {offsets = [0, 0], sizes = [8, 1], strides = [1, 1]} : vector<8x2xf32> to vector<8x1xf32>
    %26 = arith.cmpf ogt, %24, %25 : vector<8x1xf32>
    %27 = arith.extui %26 : vector<8x1xi1> to vector<8x1xi32>
    %28 = arith.sitofp %27 : vector<8x1xi32> to vector<8x1xf32>
    %29 = tpu.iota {dimensions = array<i32: 0>} : vector<8x1xi32>
    %c0_i32 = arith.constant 0 : i32
    %30 = vector.broadcast %c0_i32 : i32 to vector<8x1xi32>
    %31 = arith.cmpi eq, %29, %30 : vector<8x1xi32>
    %32 = arith.extui %31 : vector<8x1xi1> to vector<8x1xi32>
    %33 = arith.sitofp %32 : vector<8x1xi32> to vector<8x1xf32>
    %34 = arith.mulf %28, %1 : vector<8x1xf32>
    %cst_16 = arith.constant 1.000000e+00 : f32
    %35 = vector.broadcast %cst_16 : f32 to vector<8x1xf32>
    %36 = arith.select %31, %35, %34 : vector<8x1xi1>, vector<8x1xf32>
    %c0_17 = arith.constant 0 : index
    %c0_18 = arith.constant 0 : index
    %37 = vector.load %arg6[%c0_17, %c0_18] : memref<64x64xbf16, #tpu.memory_space<vmem>>, vector<64x64xbf16>
    %38 = arith.truncf %17 : vector<8x64xf32> to vector<8x64xbf16>
    %cst_19 = arith.constant dense<0.000000e+00> : vector<8x64xf32>
    %39 = tpu.matmul %38, %37, %cst_19 {dimension_numbers = #tpu.dot_dimension_numbers<[1], [0], [0], [1], [0, 0, 1, 1], [], []>} : vector<8x64xbf16>, vector<64x64xbf16>, vector<8x64xf32> -> vector<8x64xf32>
    %c0_20 = arith.constant 0 : index
    %c0_21 = arith.constant 0 : index
    %40 = vector.load %arg7[%c0_20, %c0_21] : memref<1x64xf32, #tpu.memory_space<vmem>>, vector<1x64xf32>
    %41 = vector.broadcast %40 : vector<1x64xf32> to vector<8x64xf32>
    %42 = arith.addf %39, %41 : vector<8x64xf32>
    %43 = math.tanh %42 : vector<8x64xf32>
    %c0_22 = arith.constant 0 : index
    %c0_23 = arith.constant 0 : index
    %44 = vector.load %arg10[%c0_22, %c0_23] : memref<64x4xbf16, #tpu.memory_space<vmem>>, vector<64x4xbf16>
    %45 = arith.truncf %43 : vector<8x64xf32> to vector<8x64xbf16>
    %cst_24 = arith.constant dense<0.000000e+00> : vector<8x4xf32>
    %46 = tpu.matmul %45, %44, %cst_24 {dimension_numbers = #tpu.dot_dimension_numbers<[1], [0], [0], [1], [0, 0, 1, 1], [], []>} : vector<8x64xbf16>, vector<64x4xbf16>, vector<8x4xf32> -> vector<8x4xf32>
    %c0_25 = arith.constant 0 : index
    %c0_26 = arith.constant 0 : index
    %47 = vector.load %arg11[%c0_25, %c0_26] : memref<1x4xf32, #tpu.memory_space<vmem>>, vector<1x4xf32>
    %48 = vector.broadcast %47 : vector<1x4xf32> to vector<8x4xf32>
    %49 = arith.addf %46, %48 : vector<8x4xf32>
    %50 = vector.extract_strided_slice %49 {offsets = [0, 0], sizes = [1, 4], strides = [1, 1]} : vector<8x4xf32> to vector<1x4xf32>
    %51 = vector.extract_strided_slice %50 {offsets = [0, 0], sizes = [1, 2], strides = [1, 1]} : vector<1x4xf32> to vector<1x2xf32>
    %cst_27 = arith.constant 1.000000e+00 : f32
    %52 = vector.broadcast %cst_27 : f32 to vector<1x1xf32>
    %53 = arith.subf %52, %2 : vector<1x1xf32>
    %c0_28 = arith.constant 0 : index
    %c0_29 = arith.constant 0 : index
    %54 = vector.load %arg12[%c0_28, %c0_29] : memref<2x2xf32, #tpu.memory_space<vmem>>, vector<1x2xf32>
    %55 = vector.broadcast %53 : vector<1x1xf32> to vector<1x2xf32>
    %56 = arith.mulf %55, %54 : vector<1x2xf32>
    %c1_30 = arith.constant 1 : index
    %c0_31 = arith.constant 0 : index
    %57 = vector.load %arg12[%c1_30, %c0_31] : memref<2x2xf32, #tpu.memory_space<vmem>>, vector<1x2xf32>
    %58 = vector.broadcast %2 : vector<1x1xf32> to vector<1x2xf32>
    %59 = arith.mulf %58, %57 : vector<1x2xf32>
    %60 = arith.addf %56, %59 : vector<1x2xf32>
    %61 = vector.extract_strided_slice %50 {offsets = [0, 2], sizes = [1, 2], strides = [1, 1]} : vector<1x4xf32> to vector<1x2xf32>
    %62 = arith.addf %61, %60 : vector<1x2xf32>
    %c1_i32 = arith.constant 1 : i32
    %63 = tpu.dynamic_rotate %36 by %c1_i32 dim 0 : vector<8x1xf32>, i32 -> vector<8x1xf32>
    %64 = arith.subf %36, %63 : vector<8x1xf32>
    %65 = math.absf %64 : vector<8x1xf32>
    %cst_32 = arith.constant 1.000000e+00 : f32
    %66 = vector.broadcast %cst_32 : f32 to vector<8x1xf32>
    %67 = arith.subf %66, %33 : vector<8x1xf32>
    %68 = arith.mulf %65, %67 : vector<8x1xf32>
    %69 = tpu.concatenate %36, %1, %68 in 1 : vector<8x1xf32>, vector<8x1xf32>, vector<8x1xf32> -> vector<8x3xf32>
    %cst_33 = arith.constant dense<0.000000e+00> : vector<3xf32>
    %70 = vector.multi_reduction <add>, %69, %cst_33 [0] : vector<8x3xf32> to vector<3xf32>
    %71 = vector.shape_cast %70 : vector<3xf32> to vector<1x3xf32>
    %72 = vector.extract_strided_slice %71 {offsets = [0, 0], sizes = [1, 1], strides = [1, 1]} : vector<1x3xf32> to vector<1x1xf32>
    %73 = vector.extract_strided_slice %71 {offsets = [0, 1], sizes = [1, 1], strides = [1, 1]} : vector<1x3xf32> to vector<1x1xf32>
    %74 = vector.extract_strided_slice %71 {offsets = [0, 2], sizes = [1, 1], strides = [1, 1]} : vector<1x3xf32> to vector<1x1xf32>
    %cst_34 = arith.constant 9.99999993E-9 : f32
    %75 = vector.broadcast %cst_34 : f32 to vector<1x1xf32>
    %76 = arith.addf %73, %75 : vector<1x1xf32>
    %77 = arith.divf %72, %76 : vector<1x1xf32>
    %cst_35 = arith.constant 5.000000e-01 : f32
    %78 = vector.broadcast %cst_35 : f32 to vector<1x1xf32>
    %79 = arith.subf %77, %78 : vector<1x1xf32>
    %80 = math.absf %79 : vector<1x1xf32>
    %cst_36 = arith.constant 1.000000e+00 : f32
    %81 = vector.broadcast %cst_36 : f32 to vector<1x1xf32>
    %82 = arith.subf %73, %81 : vector<1x1xf32>
    %cst_37 = arith.constant 9.99999993E-9 : f32
    %83 = vector.broadcast %cst_37 : f32 to vector<1x1xf32>
    %84 = arith.addf %82, %83 : vector<1x1xf32>
    %85 = arith.divf %74, %84 : vector<1x1xf32>
    %86 = tpu.concatenate %23, %36, %28 in 1 : vector<8x2xf32>, vector<8x1xf32>, vector<8x1xf32> -> vector<8x4xf32>
    %87 = tpu.concatenate %51, %62, %80, %85 in 1 : vector<1x2xf32>, vector<1x2xf32>, vector<1x1xf32>, vector<1x1xf32> -> vector<1x6xf32>
    %88 = vector.broadcast %33 : vector<8x1xf32> to vector<8x6xf32>
    %89 = vector.broadcast %87 : vector<1x6xf32> to vector<8x6xf32>
    %90 = arith.mulf %88, %89 : vector<8x6xf32>
    %cst_38 = arith.constant 0.000000e+00 : f32
    %91 = vector.broadcast %cst_38 : f32 to vector<8x118xf32>
    %92 = tpu.concatenate %86, %90, %91 in 1 : vector<8x4xf32>, vector<8x6xf32>, vector<8x118xf32> -> vector<8x128xf32>
    %c0_39 = arith.constant 0 : index
    %c0_40 = arith.constant 0 : index
    %93 = vector.load %arg13[%c0_39, %c0_40] : memref<8x128xf32, #tpu.memory_space<vmem>>, vector<8x128xf32>
    tpu.vector_store %arg13[%c0_39, %c0_40], %92 {strides = array<i32>} : memref<8x128xf32, #tpu.memory_space<vmem>>, vector<8x128xf32>,
    return
  }
  func.func @transform_0(%arg0: i32) -> (i32, i32) {
    %c0_i32 = arith.constant 0 : i32
    %c0_i32_0 = arith.constant 0 : i32
    return %arg0, %c0_i32 : i32, i32
  }
  func.func @transform_1(%arg0: i32) -> (i32, i32) {
    %c0_i32 = arith.constant 0 : i32
    %c0_i32_0 = arith.constant 0 : i32
    return %arg0, %c0_i32 : i32, i32
  }
  func.func @transform_2(%arg0: i32) -> (i32, i32) {
    %c0_i32 = arith.constant 0 : i32
    %c0_i32_0 = arith.constant 0 : i32
    %c0_i32_1 = arith.constant 0 : i32
    return %c0_i32, %c0_i32_0 : i32, i32
  }
  func.func @transform_3(%arg0: i32) -> (i32, i32) {
    %c0_i32 = arith.constant 0 : i32
    %c0_i32_0 = arith.constant 0 : i32
    %c0_i32_1 = arith.constant 0 : i32
    return %c0_i32, %c0_i32_0 : i32, i32
  }
  func.func @transform_4(%arg0: i32) -> (i32, i32) {
    %c0_i32 = arith.constant 0 : i32
    %c0_i32_0 = arith.constant 0 : i32
    %c0_i32_1 = arith.constant 0 : i32
    return %c0_i32, %c0_i32_0 : i32, i32
  }
  func.func @transform_5(%arg0: i32) -> (i32, i32) {
    %c0_i32 = arith.constant 0 : i32
    %c0_i32_0 = arith.constant 0 : i32
    %c0_i32_1 = arith.constant 0 : i32
    return %c0_i32, %c0_i32_0 : i32, i32
  }
  func.func @transform_6(%arg0: i32) -> (i32, i32) {
    %c0_i32 = arith.constant 0 : i32
    %c0_i32_0 = arith.constant 0 : i32
    %c0_i32_1 = arith.constant 0 : i32
    return %c0_i32, %c0_i32_0 : i32, i32
  }
  func.func @transform_7(%arg0: i32) -> (i32, i32) {
    %c0_i32 = arith.constant 0 : i32
    %c0_i32_0 = arith.constant 0 : i32
    %c0_i32_1 = arith.constant 0 : i32
    return %c0_i32, %c0_i32_0 : i32, i32
  }
  func.func @transform_8(%arg0: i32) -> (i32, i32) {
    %c0_i32 = arith.constant 0 : i32
    %c0_i32_0 = arith.constant 0 : i32
    %c0_i32_1 = arith.constant 0 : i32
    return %c0_i32, %c0_i32_0 : i32, i32
  }
  func.func @transform_9(%arg0: i32) -> (i32, i32) {
    %c0_i32 = arith.constant 0 : i32
    %c0_i32_0 = arith.constant 0 : i32
    %c0_i32_1 = arith.constant 0 : i32
    return %c0_i32, %c0_i32_0 : i32, i32
  }
  func.func @transform_10(%arg0: i32) -> (i32, i32) {
    %c0_i32 = arith.constant 0 : i32
    %c0_i32_0 = arith.constant 0 : i32
    %c0_i32_1 = arith.constant 0 : i32
    return %c0_i32, %c0_i32_0 : i32, i32
  }
  func.func @transform_11(%arg0: i32) -> (i32, i32) {
    %c0_i32 = arith.constant 0 : i32
    %c0_i32_0 = arith.constant 0 : i32
    %c0_i32_1 = arith.constant 0 : i32
    return %c0_i32, %c0_i32_0 : i32, i32
  }
  func.func @transform_12(%arg0: i32) -> (i32, i32) {
    %c0_i32 = arith.constant 0 : i32
    %c0_i32_0 = arith.constant 0 : i32
    return %arg0, %c0_i32 : i32, i32
  }
}

</mosaic_0001>

<llo_original>
// kernel: invrat_forward.1
$region0: #{invrat_forward.1}
  #allocation0 [shape = 'u32[]', space=smem, size = 0x4, offset = 0x4, fixed_abs, tag = 'smem constant byte address 0x4 - core index']
  #allocation1 [shape = 'u32[144,128]{1,0:T(1,128)}', space=vmem, size = 0x12000, scoped, tag = 'internal scratch']
  %s0 = inlined_call_operand.vmem [shape: s32[16,1], index: 0, kind: input, shape index: {}]
  %s1 = inlined_call_operand.vmem [shape: f32[16,2], index: 1, kind: input, shape index: {}]
  %s2 = inlined_call_operand.vmem [shape: bf16[128,64], index: 2, kind: input, shape index: {}]
  %s3 = inlined_call_operand.vmem [shape: bf16[64,64], index: 3, kind: input, shape index: {}]
  %s4 = inlined_call_operand.vmem [shape: f32[1,64], index: 4, kind: input, shape index: {}]
  %s5 = inlined_call_operand.vmem [shape: bf16[64,64], index: 5, kind: input, shape index: {}]
  %s6 = inlined_call_operand.vmem [shape: f32[1,64], index: 6, kind: input, shape index: {}]
  %s7 = inlined_call_operand.vmem [shape: bf16[64,2], index: 7, kind: input, shape index: {}]
  %s8 = inlined_call_operand.vmem [shape: f32[1,2], index: 8, kind: input, shape index: {}]
  %s9 = inlined_call_operand.vmem [shape: bf16[64,4], index: 9, kind: input, shape index: {}]
  %s10 = inlined_call_operand.vmem [shape: f32[1,4], index: 10, kind: input, shape index: {}]
  %s11 = inlined_call_operand.vmem [shape: f32[2,2], index: 11, kind: input, shape index: {}]
  %s12 = inlined_call_operand.vmem [shape: f32[16,128], index: 12, kind: output, shape index: {}]
  %s13 = sld [smem:[#allocation0]]
  $region81: #{invrat_forward.1} parent=0
    _
  %s15 = ssub.s32 1, %s13
  %s16 = scalar_select 0, %s15, %s13
  loop: start=0, step=1, limit=4
  $region2: #{invrat_forward.1} parent=0 // loop_pre_header
    _
  $region3: #{invrat_forward.1} parent=0 // loop_header
    %s18 = sphi 0, %s22
    %p19 = scmp.ge.s32.totalorder %s18, 4
    %s28 = sphi 0, %s30
    %s31 = sphi 0, %s28
    %s32 = sphi 0, %s31
    %s48 = sphi 0, %s32
    %s54 = sphi 0, %s56
    %s57 = sphi 0, %s54
    %s58 = sphi 0, %s57
    %s74 = sphi 0, %s58
    %s78 = sphi 0, %s78
    %s80 = sphi 0, %s78
    %s81 = sphi 0, %s80
    %s95 = sphi 0, %s81
    %s99 = sphi 0, %s99
    %s101 = sphi 0, %s99
    %s102 = sphi 0, %s101
    %s116 = sphi 0, %s102
    %s120 = sphi 0, %s120
    %s122 = sphi 0, %s120
    %s123 = sphi 0, %s122
    %s137 = sphi 0, %s123
    %s141 = sphi 0, %s141
    %s143 = sphi 0, %s141
    %s144 = sphi 0, %s143
    %s158 = sphi 0, %s144
    %s162 = sphi 0, %s162
    %s164 = sphi 0, %s162
    %s165 = sphi 0, %s164
    %s179 = sphi 0, %s165
    %s183 = sphi 0, %s183
    %s185 = sphi 0, %s183
    %s186 = sphi 0, %s185
    %s200 = sphi 0, %s186
    %s204 = sphi 0, %s204
    %s206 = sphi 0, %s204
    %s207 = sphi 0, %s206
    %s221 = sphi 0, %s207
    %s225 = sphi 0, %s225
    %s227 = sphi 0, %s225
    %s228 = sphi 0, %s227
    %s242 = sphi 0, %s228
    %s246 = sphi 0, %s246
    %s248 = sphi 0, %s246
    %s249 = sphi 0, %s248
    %s263 = sphi 0, %s249
    %s267 = sphi 0, %s267
    %s269 = sphi 0, %s267
    %s270 = sphi 0, %s269
    %s284 = sphi 0, %s270
    %s290 = sphi 0, %s292
    %s293 = sphi 0, %s290
    %s294 = sphi 0, %s293
    %s310 = sphi 0, %s294
  $region4: #{invrat_forward.1} parent=0 // loop_header_branch
    %21 = sbr.rel (%p19) target = $region8
  $region5: #{invrat_forward.1} parent=0 // loop_body
    %s23 = ssub.s32 %s18, 1
    %s24 = ssub.s32 %s18, 2
    %s25 = sadd.s32 %s18, 1
    %s26 = ssub.s32 %s18, %s25
    %p27 = scmp.eq.s32.totalorder %s26, 0
    %s29 = sadd.s32 %s28, 1
    %s30 = scalar_select %p27, %s28, %s29
    %p33 = pneg %p27
    %p34 = scmp.eq.s32.totalorder %s18, 1
    %p35 = por %p33, %p34
    %p36 = scmp.ne.s32.totalorder %s28, %s31
    %p37 = scmp.eq.s32.totalorder %s18, 0
    %p38 = por %p36, %p37
    %p39 = scmp.ne.s32.totalorder %s28, %s31
    %p40 = scmp.eq.s32.totalorder %s23, 1
    %p41 = por %p39, %p40
    %p42 = scmp.ne.s32.totalorder %s31, %s32
    %p43 = scmp.eq.s32.totalorder %s23, 0
    %p44 = por %p42, %p43
    %p45 = scmp.ne.s32.totalorder %s31, %s32
    %p46 = scmp.eq.s32.totalorder %s24, 1
    %p47 = por %p45, %p46
    %p49 = scmp.ne.s32.totalorder %s32, %s48
    %p50 = scmp.eq.s32.totalorder %s24, 0
    %p51 = por %p49, %p50
    %s52 = ssub.s32 %s18, %s25
    %p53 = scmp.eq.s32.totalorder %s52, 0
    %s55 = sadd.s32 %s54, 1
    %s56 = scalar_select %p53, %s54, %s55
    %p59 = pneg %p53
    %p60 = scmp.eq.s32.totalorder %s18, 1
    %p61 = por %p59, %p60
    %p62 = scmp.ne.s32.totalorder %s54, %s57
    %p63 = scmp.eq.s32.totalorder %s18, 0
    %p64 = por %p62, %p63
    %p65 = scmp.ne.s32.totalorder %s54, %s57
    %p66 = scmp.eq.s32.totalorder %s23, 1
    %p67 = por %p65, %p66
    %p68 = scmp.ne.s32.totalorder %s57, %s58
    %p69 = scmp.eq.s32.totalorder %s23, 0
    %p70 = por %p68, %p69
    %p71 = scmp.ne.s32.totalorder %s57, %s58
    %p72 = scmp.eq.s32.totalorder %s24, 1
    %p73 = por %p71, %p72
    %p75 = scmp.ne.s32.totalorder %s58, %s74
    %p76 = scmp.eq.s32.totalorder %s24, 0
    %p77 = por %p75, %p76
    %s79 = sadd.s32 %s78, 1
    %p82 = scmp.eq.s32.totalorder %s18, 1
    %p83 = scmp.ne.s32.totalorder %s78, %s80
    %p84 = scmp.eq.s32.totalorder %s18, 0
    %p85 = por %p83, %p84
    %p86 = scmp.ne.s32.totalorder %s78, %s80
    %p87 = scmp.eq.s32.totalorder %s23, 1
    %p88 = por %p86, %p87
    %p89 = scmp.ne.s32.totalorder %s80, %s81
    %p90 = scmp.eq.s32.totalorder %s23, 0
    %p91 = por %p89, %p90
    %p92 = scmp.ne.s32.totalorder %s80, %s81
    %p93 = scmp.eq.s32.totalorder %s24, 1
    %p94 = por %p92, %p93
    %p96 = scmp.ne.s32.totalorder %s81, %s95
    %p97 = scmp.eq.s32.totalorder %s24, 0
    %p98 = por %p96, %p97
    %s100 = sadd.s32 %s99, 1
    %p103 = scmp.eq.s32.totalorder %s18, 1
    %p104 = scmp.ne.s32.totalorder %s99, %s101
    %p105 = scmp.eq.s32.totalorder %s18, 0
    %p106 = por %p104, %p105
    %p107 = scmp.ne.s32.totalorder %s99, %s101
    %p108 = scmp.eq.s32.totalorder %s23, 1
    %p109 = por %p107, %p108
    %p110 = scmp.ne.s32.totalorder %s101, %s102
    %p111 = scmp.eq.s32.totalorder %s23, 0
    %p112 = por %p110, %p111
    %p113 = scmp.ne.s32.totalorder %s101, %s102
    %p114 = scmp.eq.s32.totalorder %s24, 1
    %p115 = por %p113, %p114
    %p117 = scmp.ne.s32.totalorder %s102, %s116
    %p118 = scmp.eq.s32.totalorder %s24, 0
    %p119 = por %p117, %p118
    %s121 = sadd.s32 %s120, 1
    %p124 = scmp.eq.s32.totalorder %s18, 1
    %p125 = scmp.ne.s32.totalorder %s120, %s122
    %p126 = scmp.eq.s32.totalorder %s18, 0
    %p127 = por %p125, %p126
    %p128 = scmp.ne.s32.totalorder %s120, %s122
    %p129 = scmp.eq.s32.totalorder %s23, 1
    %p130 = por %p128, %p129
    %p131 = scmp.ne.s32.totalorder %s122, %s123
    %p132 = scmp.eq.s32.totalorder %s23, 0
    %p133 = por %p131, %p132
    %p134 = scmp.ne.s32.totalorder %s122, %s123
    %p135 = scmp.eq.s32.totalorder %s24, 1
    %p136 = por %p134, %p135
    %p138 = scmp.ne.s32.totalorder %s123, %s137
    %p139 = scmp.eq.s32.totalorder %s24, 0
    %p140 = por %p138, %p139
    %s142 = sadd.s32 %s141, 1
    %p145 = scmp.eq.s32.totalorder %s18, 1
    %p146 = scmp.ne.s32.totalorder %s141, %s143
    %p147 = scmp.eq.s32.totalorder %s18, 0
    %p148 = por %p146, %p147
    %p149 = scmp.ne.s32.totalorder %s141, %s143
    %p150 = scmp.eq.s32.totalorder %s23, 1
    %p151 = por %p149, %p150
    %p152 = scmp.ne.s32.totalorder %s143, %s144
    %p153 = scmp.eq.s32.totalorder %s23, 0
    %p154 = por %p152, %p153
    %p155 = scmp.ne.s32.totalorder %s143, %s144
    %p156 = scmp.eq.s32.totalorder %s24, 1
    %p157 = por %p155, %p156
    %p159 = scmp.ne.s32.totalorder %s144, %s158
    %p160 = scmp.eq.s32.totalorder %s24, 0
    %p161 = por %p159, %p160
    %s163 = sadd.s32 %s162, 1
    %p166 = scmp.eq.s32.totalorder %s18, 1
    %p167 = scmp.ne.s32.totalorder %s162, %s164
    %p168 = scmp.eq.s32.totalorder %s18, 0
    %p169 = por %p167, %p168
    %p170 = scmp.ne.s32.totalorder %s162, %s164
    %p171 = scmp.eq.s32.totalorder %s23, 1
    %p172 = por %p170, %p171
    %p173 = scmp.ne.s32.totalorder %s164, %s165
    %p174 = scmp.eq.s32.totalorder %s23, 0
    %p175 = por %p173, %p174
    %p176 = scmp.ne.s32.totalorder %s164, %s165
    %p177 = scmp.eq.s32.totalorder %s24, 1
    %p178 = por %p176, %p177
    %p180 = scmp.ne.s32.totalorder %s165, %s179
    %p181 = scmp.eq.s32.totalorder %s24, 0
    %p182 = por %p180, %p181
    %s184 = sadd.s32 %s183, 1
    %p187 = scmp.eq.s32.totalorder %s18, 1
    %p188 = scmp.ne.s32.totalorder %s183, %s185
    %p189 = scmp.eq.s32.totalorder %s18, 0
    %p190 = por %p188, %p189
    %p191 = scmp.ne.s32.totalorder %s183, %s185
    %p192 = scmp.eq.s32.totalorder %s23, 1
    %p193 = por %p191, %p192
    %p194 = scmp.ne.s32.totalorder %s185, %s186
    %p195 = scmp.eq.s32.totalorder %s23, 0
    %p196 = por %p194, %p195
    %p197 = scmp.ne.s32.totalorder %s185, %s186
    %p198 = scmp.eq.s32.totalorder %s24, 1
    %p199 = por %p197, %p198
    %p201 = scmp.ne.s32.totalorder %s186, %s200
    %p202 = scmp.eq.s32.totalorder %s24, 0
    %p203 = por %p201, %p202
    %s205 = sadd.s32 %s204, 1
    %p208 = scmp.eq.s32.totalorder %s18, 1
    %p209 = scmp.ne.s32.totalorder %s204, %s206
    %p210 = scmp.eq.s32.totalorder %s18, 0
    %p211 = por %p209, %p210
    %p212 = scmp.ne.s32.totalorder %s204, %s206
    %p213 = scmp.eq.s32.totalorder %s23, 1
    %p214 = por %p212, %p213
    %p215 = scmp.ne.s32.totalorder %s206, %s207
    %p216 = scmp.eq.s32.totalorder %s23, 0
    %p217 = por %p215, %p216
    %p218 = scmp.ne.s32.totalorder %s206, %s207
    %p219 = scmp.eq.s32.totalorder %s24, 1
    %p220 = por %p218, %p219
    %p222 = scmp.ne.s32.totalorder %s207, %s221
    %p223 = scmp.eq.s32.totalorder %s24, 0
    %p224 = por %p222, %p223
    %s226 = sadd.s32 %s225, 1
    %p229 = scmp.eq.s32.totalorder %s18, 1
    %p230 = scmp.ne.s32.totalorder %s225, %s227
    %p231 = scmp.eq.s32.totalorder %s18, 0
    %p232 = por %p230, %p231
    %p233 = scmp.ne.s32.totalorder %s225, %s227
    %p234 = scmp.eq.s32.totalorder %s23, 1
    %p235 = por %p233, %p234
    %p236 = scmp.ne.s32.totalorder %s227, %s228
    %p237 = scmp.eq.s32.totalorder %s23, 0
    %p238 = por %p236, %p237
    %p239 = scmp.ne.s32.totalorder %s227, %s228
    %p240 = scmp.eq.s32.totalorder %s24, 1
    %p241 = por %p239, %p240
    %p243 = scmp.ne.s32.totalorder %s228, %s242
    %p244 = scmp.eq.s32.totalorder %s24, 0
    %p245 = por %p243, %p244
    %s247 = sadd.s32 %s246, 1
    %p250 = scmp.eq.s32.totalorder %s18, 1
    %p251 = scmp.ne.s32.totalorder %s246, %s248
    %p252 = scmp.eq.s32.totalorder %s18, 0
    %p253 = por %p251, %p252
    %p254 = scmp.ne.s32.totalorder %s246, %s248
    %p255 = scmp.eq.s32.totalorder %s23, 1
    %p256 = por %p254, %p255
    %p257 = scmp.ne.s32.totalorder %s248, %s249
    %p258 = scmp.eq.s32.totalorder %s23, 0
    %p259 = por %p257, %p258
    %p260 = scmp.ne.s32.totalorder %s248, %s249
    %p261 = scmp.eq.s32.totalorder %s24, 1
    %p262 = por %p260, %p261
    %p264 = scmp.ne.s32.totalorder %s249, %s263
    %p265 = scmp.eq.s32.totalorder %s24, 0
    %p266 = por %p264, %p265
    %s268 = sadd.s32 %s267, 1
    %p271 = scmp.eq.s32.totalorder %s18, 1
    %p272 = scmp.ne.s32.totalorder %s267, %s269
    %p273 = scmp.eq.s32.totalorder %s18, 0
    %p274 = por %p272, %p273
    %p275 = scmp.ne.s32.totalorder %s267, %s269
    %p276 = scmp.eq.s32.totalorder %s23, 1
    %p277 = por %p275, %p276
    %p278 = scmp.ne.s32.totalorder %s269, %s270
    %p279 = scmp.eq.s32.totalorder %s23, 0
    %p280 = por %p278, %p279
    %p281 = scmp.ne.s32.totalorder %s269, %s270
    %p282 = scmp.eq.s32.totalorder %s24, 1
    %p283 = por %p281, %p282
    %p285 = scmp.ne.s32.totalorder %s270, %s284
    %p286 = scmp.eq.s32.totalorder %s24, 0
    %p287 = por %p285, %p286
    %s288 = ssub.s32 %s18, %s25
    %p289 = scmp.eq.s32.totalorder %s288, 0
    %s291 = sadd.s32 %s290, 1
    %s292 = scalar_select %p289, %s290, %s291
    %p295 = pneg %p289
    %p296 = scmp.eq.s32.totalorder %s18, 1
    %p297 = por %p295, %p296
    %p298 = scmp.ne.s32.totalorder %s290, %s293
    %p299 = scmp.eq.s32.totalorder %s18, 0
    %p300 = por %p298, %p299
    %p301 = scmp.ne.s32.totalorder %s290, %s293
    %p302 = scmp.eq.s32.totalorder %s23, 1
    %p303 = por %p301, %p302
    %p304 = scmp.ne.s32.totalorder %s293, %s294
    %p305 = scmp.eq.s32.totalorder %s23, 0
    %p306 = por %p304, %p305
    %p307 = scmp.ne.s32.totalorder %s293, %s294
    %p308 = scmp.eq.s32.totalorder %s24, 1
    %p309 = por %p307, %p308
    %p311 = scmp.ne.s32.totalorder %s294, %s310
    %p312 = scmp.eq.s32.totalorder %s24, 0
    %p313 = por %p311, %p312
    %p314 = scmp.le.s32.totalorder 1, %s18
    %p315 = scmp.lt.s32.totalorder %s18, 3
    %p316 = pnand %p314, %p315
    %p317 = pneg %p316
    // Predicated region
    $region9: #{invrat_forward.1} parent=5 // pred_check
      _
    $region10: #{invrat_forward.1} parent=5 // pred_check_branch
      %319 = sbr.rel (%p316) target = $region12
    $region11: #{invrat_forward.1} parent=5 // pred_region
      %s320 = ssub.s32 %s18, 1
      // Predicated region
      $region13: #{invrat_forward.1} parent=11 // pred_check
        %p321 = pneg %p91
      $region14: #{invrat_forward.1} parent=11 // pred_check_branch
        %323 = sbr.rel (%p321) target = $region16
      $region15: #{invrat_forward.1} parent=11 // pred_region
        _
      $region16: #{invrat_forward.1} parent=11 // pred_fallthru
        _
      // Predicated region
      $region17: #{invrat_forward.1} parent=11 // pred_check
        %p324 = pneg %p112
      $region18: #{invrat_forward.1} parent=11 // pred_check_branch
        %326 = sbr.rel (%p324) target = $region20
      $region19: #{invrat_forward.1} parent=11 // pred_region
        _
      $region20: #{invrat_forward.1} parent=11 // pred_fallthru
        _
      // Predicated region
      $region21: #{invrat_forward.1} parent=11 // pred_check
        %p327 = pneg %p133
      $region22: #{invrat_forward.1} parent=11 // pred_check_branch
        %329 = sbr.rel (%p327) target = $region24
      $region23: #{invrat_forward.1} parent=11 // pred_region
        _
      $region24: #{invrat_forward.1} parent=11 // pred_fallthru
        _
      // Predicated region
      $region25: #{invrat_forward.1} parent=11 // pred_check
        %p330 = pneg %p154
      $region26: #{invrat_forward.1} parent=11 // pred_check_branch
        %332 = sbr.rel (%p330) target = $region28
      $region27: #{invrat_forward.1} parent=11 // pred_region
        _
      $region28: #{invrat_forward.1} parent=11 // pred_fallthru
        _
      // Predicated region
      $region29: #{invrat_forward.1} parent=11 // pred_check
        %p333 = pneg %p175
      $region30: #{invrat_forward.1} parent=11 // pred_check_branch
        %335 = sbr.rel (%p333) target = $region32
      $region31: #{invrat_forward.1} parent=11 // pred_region
        _
      $region32: #{invrat_forward.1} parent=11 // pred_fallthru
        _
      // Predicated region
      $region33: #{invrat_forward.1} parent=11 // pred_check
        %p336 = pneg %p196
      $region34: #{invrat_forward.1} parent=11 // pred_check_branch
        %338 = sbr.rel (%p336) target = $region36
      $region35: #{invrat_forward.1} parent=11 // pred_region
        _
      $region36: #{invrat_forward.1} parent=11 // pred_fallthru
        _
      // Predicated region
      $region37: #{invrat_forward.1} parent=11 // pred_check
        %p339 = pneg %p217
      $region38: #{invrat_forward.1} parent=11 // pred_check_branch
        %341 = sbr.rel (%p339) target = $region40
      $region39: #{invrat_forward.1} parent=11 // pred_region
        _
      $region40: #{invrat_forward.1} parent=11 // pred_fallthru
        _
      // Predicated region
      $region41: #{invrat_forward.1} parent=11 // pred_check
        %p342 = pneg %p238
      $region42: #{invrat_forward.1} parent=11 // pred_check_branch
        %344 = sbr.rel (%p342) target = $region44
      $region43: #{invrat_forward.1} parent=11 // pred_region
        _
      $region44: #{invrat_forward.1} parent=11 // pred_fallthru
        _
      // Predicated region
      $region45: #{invrat_forward.1} parent=11 // pred_check
        %p345 = pneg %p259
      $region46: #{invrat_forward.1} parent=11 // pred_check_branch
        %347 = sbr.rel (%p345) target = $region48
      $region47: #{invrat_forward.1} parent=11 // pred_region
        _
      $region48: #{invrat_forward.1} parent=11 // pred_fallthru
        _
      // Predicated region
      $region49: #{invrat_forward.1} parent=11 // pred_check
        %p348 = pneg %p280
      $region50: #{invrat_forward.1} parent=11 // pred_check_branch
        %350 = sbr.rel (%p348) target = $region52
      $region51: #{invrat_forward.1} parent=11 // pred_region
        _
      $region52: #{invrat_forward.1} parent=11 // pred_fallthru
        _
    $region12: #{invrat_forward.1} parent=5 // pred_fallthru
      _
    %p351 = scmp.lt.s32.totalorder %s18, 2
    // Predicated region
    $region53: #{invrat_forward.1} parent=5 // pred_check
      %p352 = pneg %p351
    $region54: #{invrat_forward.1} parent=5 // pred_check_branch
      %354 = sbr.rel (%p352) target = $region56
    $region55: #{invrat_forward.1} parent=5 // pred_region
      // Predicated region
      $region57: #{invrat_forward.1} parent=55 // pred_check
        %p355 = pneg %p38
      $region58: #{invrat_forward.1} parent=55 // pred_check_branch
        %357 = sbr.rel (%p355) target = $region60
      $region59: #{invrat_forward.1} parent=55 // pred_region
        %p358 = scmp.lt.s32.totalorder %s18, 1
        %s359 = scalar_select %p358, %s18, 1
        %s360 = smul.addr %s359, 8
        %s361 = scalar_lea.vmem %s0, %s360
      $region60: #{invrat_forward.1} parent=55 // pred_fallthru
        _
      // Predicated region
      $region61: #{invrat_forward.1} parent=55 // pred_check
        %p362 = pneg %p64
      $region62: #{invrat_forward.1} parent=55 // pred_check_branch
        %364 = sbr.rel (%p362) target = $region64
      $region63: #{invrat_forward.1} parent=55 // pred_region
        %p365 = scmp.lt.s32.totalorder %s18, 1
        %s366 = scalar_select %p365, %s18, 1
        %s367 = smul.addr %s366, 8
        %s368 = scalar_lea.vmem %s1, %s367
      $region64: #{invrat_forward.1} parent=55 // pred_fallthru
        _
    $region56: #{invrat_forward.1} parent=5 // pred_fallthru
      _
    %p369 = scmp.le.s32.totalorder 1, %s18
    %p370 = scmp.lt.s32.totalorder %s18, 3
    %p371 = pnand %p369, %p370
    %p372 = pneg %p371
    // Predicated region
    $region65: #{invrat_forward.1} parent=5 // pred_check
      _
    $region66: #{invrat_forward.1} parent=5 // pred_check_branch
      %374 = sbr.rel (%p371) target = $region68
    $region67: #{invrat_forward.1} parent=5 // pred_region
      %s375 = ssub.s32 %s18, 1
      %p376 = scmp.lt.s32.totalorder %s23, 1
      %s377 = scalar_select %p376, %s23, 1
      %s378 = smul.addr %s377, 8
      %s379 = scalar_lea.vmem %s0, %s378
      %p380 = pneg %p44
      %p381 = pneg %p41
      %p382 = scmp.lt.s32.totalorder %s23, 1
      %s383 = scalar_select %p382, %s23, 1
      %s384 = smul.addr %s383, 8
      %s385 = scalar_lea.vmem %s1, %s384
      %p386 = pneg %p70
      %p387 = pneg %p67
      %p388 = pneg %p91
      %p389 = pneg %p88
      %p390 = pneg %p112
      %p391 = pneg %p109
      %p392 = pneg %p133
      %p393 = pneg %p130
      %p394 = pneg %p154
      %p395 = pneg %p151
      %p396 = pneg %p175
      %p397 = pneg %p172
      %p398 = pneg %p196
      %p399 = pneg %p193
      %p400 = pneg %p217
      %p401 = pneg %p214
      %p402 = pneg %p238
      %p403 = pneg %p235
      %p404 = pneg %p259
      %p405 = pneg %p256
      %p406 = pneg %p280
      %p407 = pneg %p277
      %p408 = pneg %p306
      %p409 = pneg %p303
      %p410 = scmp.lt.s32.totalorder %s23, 1
      %s411 = scalar_select %p410, %s23, 1
      %s412 = smul.addr %s411, 8
      %s413 = scalar_lea.vmem %s12, %s412
      %p414 = scmp.lt.s32.totalorder %s23, 1
      %s415 = scalar_select %p414, %s23, 1
      %s416 = smul.addr %s415, 8
      %s417 = scalar_lea.vmem %s0, %s416
      %p418 = scmp.lt.s32.totalorder %s23, 1
      %s419 = scalar_select %p418, %s23, 1
      %s420 = smul.addr %s419, 8
      %s421 = scalar_lea.vmem %s1, %s420
      %p422 = scmp.lt.s32.totalorder %s23, 1
      %s423 = scalar_select %p422, %s23, 1
      %s424 = smul.addr %s423, 8
      %s425 = scalar_lea.vmem %s12, %s424
      %v427 = vld [vmem:[%s417] sm:$0xff]
      %v428 = vld [vmem:[%s421] sm:$0xff]
      %v429 = vld [vmem:[%s421] sm:$0x1]
      %v430 = vlaneseq
      %v431 = vand.u32 %v430, 127
      %432 = vset.pattern.permute.xlu0 0
      %433 = vperm.xlu0 %432, %v427
      %v434 = vpop.permute.xlu0 %433
      %vm435 = vcmp.eq.s32.totalorder %v434, %v431
      %v436 = vsel %vm435, 1, 0
      %v437 = vcvt.s32.f32 %v436
      %v438 = vpack.c.bf16 %v437, %v437
      %v439 = vld [vmem:[%s2] sm:$0xf]
      %v440 = vld [vmem:[%s2 + $0x4] sm:$0xf]
      %v441 = vld [vmem:[%s2 + $0x8] sm:$0xf]
      %v442 = vld [vmem:[%s2 + $0xc] sm:$0xf]
      %v443 = vld [vmem:[%s2 + $0x10] sm:$0xf]
      %v444 = vld [vmem:[%s2 + $0x14] sm:$0xf]
      %v445 = vld [vmem:[%s2 + $0x18] sm:$0xf]
      %v446 = vld [vmem:[%s2 + $0x1c] sm:$0xf]
      %v447 = vld [vmem:[%s2 + $0x20] sm:$0xf]
      %v448 = vld [vmem:[%s2 + $0x24] sm:$0xf]
      %v449 = vld [vmem:[%s2 + $0x28] sm:$0xf]
      %v450 = vld [vmem:[%s2 + $0x2c] sm:$0xf]
      %v451 = vld [vmem:[%s2 + $0x30] sm:$0xf]
      %v452 = vld [vmem:[%s2 + $0x34] sm:$0xf]
      %v453 = vld [vmem:[%s2 + $0x38] sm:$0xf]
      %v454 = vld [vmem:[%s2 + $0x3c] sm:$0xf]
      %v471 = vunpack.c.l.b16 %v439
      %v472 = vunpack.c.l.b16 %v440
      %v473 = vunpack.c.l.b16 %v441
      %v474 = vunpack.c.l.b16 %v442
      %v475 = vunpack.c.l.b16 %v443
      %v476 = vunpack.c.l.b16 %v444
      %v477 = vunpack.c.l.b16 %v445
      %v478 = vunpack.c.l.b16 %v446
      %v479 = vunpack.c.l.b16 %v447
      %v480 = vunpack.c.l.b16 %v448
      %v481 = vunpack.c.l.b16 %v449
      %v482 = vunpack.c.l.b16 %v450
      %v483 = vunpack.c.l.b16 %v451
      %v484 = vunpack.c.l.b16 %v452
      %v485 = vunpack.c.l.b16 %v453
      %v486 = vunpack.c.l.b16 %v454
      %v487 = vpack.c.b16 %v472, %v471
      %v488 = vpack.c.b16 %v474, %v473
      %v489 = vpack.c.b16 %v476, %v475
      %v490 = vpack.c.b16 %v478, %v477
      %v491 = vpack.c.b16 %v480, %v479
      %v492 = vpack.c.b16 %v482, %v481
      %v493 = vpack.c.b16 %v484, %v483
      %v494 = vpack.c.b16 %v486, %v485
      %503 = vmatprep.subr.bf16.mxu0 0
      %504 = vmatpush1.bf16.msra.mxu0 %v494
      %505 = vmatprep.subr.bf16.mxu0 0
      %506 = vmatpush1.bf16.msra.mxu0 %v493
      %507 = vmatprep.subr.bf16.mxu0 0
      %508 = vmatpush1.bf16.msra.mxu0 %v492
      %509 = vmatprep.subr.bf16.mxu0 0
      %510 = vmatpush1.bf16.msra.mxu0 %v491
      %511 = vmatprep.subr.bf16.mxu0 0
      %512 = vmatpush1.bf16.msra.mxu0 %v490
      %513 = vmatprep.subr.bf16.mxu0 0
      %514 = vmatpush1.bf16.msra.mxu0 %v489
      %515 = vmatprep.subr.bf16.mxu0 0
      %516 = vmatpush1.bf16.msra.mxu0 %v488
      %517 = vmatprep.subr.bf16.mxu0 0
      %518 = vmatpush1.bf16.msra.mxu0 %v487
      %519 = vmatprep.subr.bf16.mxu0 0
      %520 = vmatpush2.bf16.msra.mxu0 0
      %521 = vmatprep.subr.bf16.mxu0 0
      %522 = vmatpush2.bf16.msra.mxu0 0
      %523 = vmatprep.subr.bf16.mxu0 0
      %524 = vmatpush2.bf16.msra.mxu0 0
      %525 = vmatprep.subr.bf16.mxu0 0
      %526 = vmatpush2.bf16.msra.mxu0 0
      %527 = vmatprep.subr.bf16.mxu0 0
      %528 = vmatpush2.bf16.msra.mxu0 0
      %529 = vmatprep.subr.bf16.mxu0 0
      %530 = vmatpush2.bf16.msra.mxu0 0
      %531 = vmatprep.subr.bf16.mxu0 0
      %532 = vmatpush2.bf16.msra.mxu0 0
      %533 = vmatprep.subr.bf16.mxu0 0
      %534 = vmatpush2.bf16.msra.mxu0 0
      %535 = vmatprep.mubr.bf16.mxu0 0
      %536 = vmatmul.mubr.bf16.gmra.mxu0 %v438
      %v537 = vpop.f32.mrf.mxu0
      %v538 = vadd.f32 0.0, %v537
      %v539 = vpop.f32.mrf.mxu0
      %v540 = vpop.f32.mrf.mxu0
      %v541 = vpop.f32.mrf.mxu0
      %542 = vdwg.mxu0
      %v543 = vld [vmem:[%s3] sm:$0xf]
      %v544 = vld [vmem:[%s3 + $0x4] sm:$0xf]
      %v545 = vld [vmem:[%s3 + $0x8] sm:$0xf]
      %v546 = vld [vmem:[%s3 + $0xc] sm:$0xf]
      %v547 = vld [vmem:[%s3 + $0x10] sm:$0xf]
      %v548 = vld [vmem:[%s3 + $0x14] sm:$0xf]
      %v549 = vld [vmem:[%s3 + $0x18] sm:$0xf]
      %v550 = vld [vmem:[%s3 + $0x1c] sm:$0xf]
      %v551 = vpack.c.bf16 %v538, %v538
      %v552 = vld [vmem:[%s4] sm:$0x1]
      %v554 = vlaneseq
      %v555 = vshrl.u32 %v554, 7
      %v556 = vsub.s32 0, %v555
      %v557 = vrot.slane %v552, %v556
      %v567 = vunpack.c.l.b16 %v543
      %v568 = vunpack.c.l.b16 %v544
      %v569 = vunpack.c.l.b16 %v545
      %v570 = vunpack.c.l.b16 %v546
      %v571 = vunpack.c.l.b16 %v547
      %v572 = vunpack.c.l.b16 %v548
      %v573 = vunpack.c.l.b16 %v549
      %v574 = vunpack.c.l.b16 %v550
      %v575 = vpack.c.b16 %v568, %v567
      %v576 = vpack.c.b16 %v570, %v569
      %v577 = vpack.c.b16 %v572, %v571
      %v578 = vpack.c.b16 %v574, %v573
      %vm583 = vcmask 523264
      %v585 = vsel %vm583, %v551, 0
      %587 = vmatprep.subr.bf16.mxu0 0
      %588 = vmatpush1.bf16.msra.mxu0 0
      %589 = vmatprep.subr.bf16.mxu0 0
      %590 = vmatpush1.bf16.msra.mxu0 0
      %591 = vmatprep.subr.bf16.mxu0 0
      %592 = vmatpush1.bf16.msra.mxu0 0
      %593 = vmatprep.subr.bf16.mxu0 0
      %594 = vmatpush1.bf16.msra.mxu0 0
      %595 = vmatprep.subr.bf16.mxu0 0
      %596 = vmatpush1.bf16.msra.mxu0 %v578
      %597 = vmatprep.subr.bf16.mxu0 0
      %598 = vmatpush1.bf16.msra.mxu0 %v577
      %599 = vmatprep.subr.bf16.mxu0 0
      %600 = vmatpush1.bf16.msra.mxu0 %v576
      %601 = vmatprep.subr.bf16.mxu0 0
      %602 = vmatpush1.bf16.msra.mxu0 %v575
      %603 = vmatprep.subr.bf16.mxu0 0
      %604 = vmatpush2.bf16.msra.mxu0 0
      %605 = vmatprep.subr.bf16.mxu0 0
      %606 = vmatpush2.bf16.msra.mxu0 0
      %607 = vmatprep.subr.bf16.mxu0 0
      %608 = vmatpush2.bf16.msra.mxu0 0
      %609 = vmatprep.subr.bf16.mxu0 0
      %610 = vmatpush2.bf16.msra.mxu0 0
      %611 = vmatprep.subr.bf16.mxu0 0
      %612 = vmatpush2.bf16.msra.mxu0 0
      %613 = vmatprep.subr.bf16.mxu0 0
      %614 = vmatpush2.bf16.msra.mxu0 0
      %615 = vmatprep.subr.bf16.mxu0 0
      %616 = vmatpush2.bf16.msra.mxu0 0
      %617 = vmatprep.subr.bf16.mxu0 0
      %618 = vmatpush2.bf16.msra.mxu0 0
      %619 = vmatprep.mubr.bf16.mxu0 0
      %620 = vmatmul.mubr.bf16.gmra.mxu0 %v585
      %v621 = vpop.f32.mrf.mxu0
      %v622 = vadd.f32 %v557, %v621
      %v623 = vpop.f32.mrf.mxu0
      %v624 = vpop.f32.mrf.mxu0
      %v625 = vpop.f32.mrf.mxu0
      %626 = vdwg.mxu0
      %v627 = vtanh.pop %v622
      %v628 = vld [vmem:[%s7] sm:$0xf]
      %v629 = vld [vmem:[%s7 + $0x4] sm:$0xf]
      %v630 = vld [vmem:[%s7 + $0x8] sm:$0xf]
      %v631 = vld [vmem:[%s7 + $0xc] sm:$0xf]
      %v632 = vld [vmem:[%s7 + $0x10] sm:$0xf]
      %v633 = vld [vmem:[%s7 + $0x14] sm:$0xf]
      %v634 = vld [vmem:[%s7 + $0x18] sm:$0xf]
      %v635 = vld [vmem:[%s7 + $0x1c] sm:$0xf]
      %v636 = vpack.c.bf16 %v627, %v627
      %v637 = vld [vmem:[%s8] sm:$0x1]
      %v639 = vlaneseq
      %v640 = vshrl.u32 %v639, 7
      %v641 = vsub.s32 0, %v640
      %v642 = vrot.slane %v637, %v641
      %v652 = vunpack.c.l.b16 %v628
      %v653 = vunpack.c.l.b16 %v629
      %v654 = vunpack.c.l.b16 %v630
      %v655 = vunpack.c.l.b16 %v631
      %v656 = vunpack.c.l.b16 %v632
      %v657 = vunpack.c.l.b16 %v633
      %v658 = vunpack.c.l.b16 %v634
      %v659 = vunpack.c.l.b16 %v635
      %v660 = vpack.c.b16 %v653, %v652
      %v661 = vpack.c.b16 %v655, %v654
      %v662 = vpack.c.b16 %v657, %v656
      %v663 = vpack.c.b16 %v659, %v658
      %v669 = vsel %vm583, %v636, 0
      %671 = vmatprep.subr.bf16.mxu0 0
      %672 = vmatpush1.bf16.msra.mxu0 0
      %673 = vmatprep.subr.bf16.mxu0 0
      %674 = vmatpush1.bf16.msra.mxu0 0
      %675 = vmatprep.subr.bf16.mxu0 0
      %676 = vmatpush1.bf16.msra.mxu0 0
      %677 = vmatprep.subr.bf16.mxu0 0
      %678 = vmatpush1.bf16.msra.mxu0 0
      %679 = vmatprep.subr.bf16.mxu0 0
      %680 = vmatpush1.bf16.msra.mxu0 %v663
      %681 = vmatprep.subr.bf16.mxu0 0
      %682 = vmatpush1.bf16.msra.mxu0 %v662
      %683 = vmatprep.subr.bf16.mxu0 0
      %684 = vmatpush1.bf16.msra.mxu0 %v661
      %685 = vmatprep.subr.bf16.mxu0 0
      %686 = vmatpush1.bf16.msra.mxu0 %v660
      %687 = vmatprep.subr.bf16.mxu0 0
      %688 = vmatpush2.bf16.msra.mxu0 0
      %689 = vmatprep.subr.bf16.mxu0 0
      %690 = vmatpush2.bf16.msra.mxu0 0
      %691 = vmatprep.subr.bf16.mxu0 0
      %692 = vmatpush2.bf16.msra.mxu0 0
      %693 = vmatprep.subr.bf16.mxu0 0
      %694 = vmatpush2.bf16.msra.mxu0 0
      %695 = vmatprep.subr.bf16.mxu0 0
      %696 = vmatpush2.bf16.msra.mxu0 0
      %697 = vmatprep.subr.bf16.mxu0 0
      %698 = vmatpush2.bf16.msra.mxu0 0
      %699 = vmatprep.subr.bf16.mxu0 0
      %700 = vmatpush2.bf16.msra.mxu0 0
      %701 = vmatprep.subr.bf16.mxu0 0
      %702 = vmatpush2.bf16.msra.mxu0 0
      %703 = vmatprep.mubr.bf16.mxu0 0
      %704 = vmatmul.mubr.bf16.gmra.mxu0 %v669
      %v705 = vpop.f32.mrf.mxu0
      %v706 = vadd.f32 %v642, %v705
      %v707 = vpop.f32.mrf.mxu0
      %v708 = vpop.f32.mrf.mxu0
      %v709 = vpop.f32.mrf.mxu0
      %710 = vdwg.mxu0
      %712 = vrot.lane.b32.xlu0 %v706, 1
      %v713 = vpop.permute.xlu0 %712
      %vm715 = vcmp.gt.f32.partialorder %v706, %v713
      %v716 = vsel %vm715, 1, 0
      %v717 = vcvt.s32.f32 %v716
      %v718 = vlaneseq
      %v719 = vshrl.u32 %v718, 7
      %vm720 = vcmp.eq.s32.totalorder %v719, 0
      %v721 = vsel %vm720, 1, 0
      %v722 = vcvt.s32.f32 %v721
      %724 = vrot.lane.b32.xlu0 %v428, 1
      %v725 = vpop.permute.xlu0 %724
      %v727 = vmul.f32 %v717, %v725
      %v728 = vsel %vm720, 1.0, %v727
      %v729 = vld [vmem:[%s5] sm:$0xf]
      %v730 = vld [vmem:[%s5 + $0x4] sm:$0xf]
      %v731 = vld [vmem:[%s5 + $0x8] sm:$0xf]
      %v732 = vld [vmem:[%s5 + $0xc] sm:$0xf]
      %v733 = vld [vmem:[%s5 + $0x10] sm:$0xf]
      %v734 = vld [vmem:[%s5 + $0x14] sm:$0xf]
      %v735 = vld [vmem:[%s5 + $0x18] sm:$0xf]
      %v736 = vld [vmem:[%s5 + $0x1c] sm:$0xf]
      %v737 = vld [vmem:[%s6] sm:$0x1]
      %v739 = vlaneseq
      %v740 = vshrl.u32 %v739, 7
      %v741 = vsub.s32 0, %v740
      %v742 = vrot.slane %v737, %v741
      %v752 = vunpack.c.l.b16 %v729
      %v753 = vunpack.c.l.b16 %v730
      %v754 = vunpack.c.l.b16 %v731
      %v755 = vunpack.c.l.b16 %v732
      %v756 = vunpack.c.l.b16 %v733
      %v757 = vunpack.c.l.b16 %v734
      %v758 = vunpack.c.l.b16 %v735
      %v759 = vunpack.c.l.b16 %v736
      %v760 = vpack.c.b16 %v753, %v752
      %v761 = vpack.c.b16 %v755, %v754
      %v762 = vpack.c.b16 %v757, %v756
      %v763 = vpack.c.b16 %v759, %v758
      %768 = vmatprep.subr.bf16.mxu0 0
      %769 = vmatpush1.bf16.msra.mxu0 0
      %770 = vmatprep.subr.bf16.mxu0 0
      %771 = vmatpush1.bf16.msra.mxu0 0
      %772 = vmatprep.subr.bf16.mxu0 0
      %773 = vmatpush1.bf16.msra.mxu0 0
      %774 = vmatprep.subr.bf16.mxu0 0
      %775 = vmatpush1.bf16.msra.mxu0 0
      %776 = vmatprep.subr.bf16.mxu0 0
      %777 = vmatpush1.bf16.msra.mxu0 %v763
      %778 = vmatprep.subr.bf16.mxu0 0
      %779 = vmatpush1.bf16.msra.mxu0 %v762
      %780 = vmatprep.subr.bf16.mxu0 0
      %781 = vmatpush1.bf16.msra.mxu0 %v761
      %782 = vmatprep.subr.bf16.mxu0 0
      %783 = vmatpush1.bf16.msra.mxu0 %v760
      %784 = vmatprep.subr.bf16.mxu0 0
      %785 = vmatpush2.bf16.msra.mxu0 0
      %786 = vmatprep.subr.bf16.mxu0 0
      %787 = vmatpush2.bf16.msra.mxu0 0
      %788 = vmatprep.subr.bf16.mxu0 0
      %789 = vmatpush2.bf16.msra.mxu0 0
      %790 = vmatprep.subr.bf16.mxu0 0
      %791 = vmatpush2.bf16.msra.mxu0 0
      %792 = vmatprep.subr.bf16.mxu0 0
      %793 = vmatpush2.bf16.msra.mxu0 0
      %794 = vmatprep.subr.bf16.mxu0 0
      %795 = vmatpush2.bf16.msra.mxu0 0
      %796 = vmatprep.subr.bf16.mxu0 0
      %797 = vmatpush2.bf16.msra.mxu0 0
      %798 = vmatprep.subr.bf16.mxu0 0
      %799 = vmatpush2.bf16.msra.mxu0 0
      %800 = vmatprep.mubr.bf16.mxu0 0
      %801 = vmatmul.mubr.bf16.gmra.mxu0 %v669
      %v802 = vpop.f32.mrf.mxu0
      %v803 = vadd.f32 %v742, %v802
      %v804 = vpop.f32.mrf.mxu0
      %v805 = vpop.f32.mrf.mxu0
      %v806 = vpop.f32.mrf.mxu0
      %807 = vdwg.mxu0
      %v808 = vtanh.pop %v803
      %v809 = vld [vmem:[%s9] sm:$0xf]
      %v810 = vld [vmem:[%s9 + $0x4] sm:$0xf]
      %v811 = vld [vmem:[%s9 + $0x8] sm:$0xf]
      %v812 = vld [vmem:[%s9 + $0xc] sm:$0xf]
      %v813 = vld [vmem:[%s9 + $0x10] sm:$0xf]
      %v814 = vld [vmem:[%s9 + $0x14] sm:$0xf]
      %v815 = vld [vmem:[%s9 + $0x18] sm:$0xf]
      %v816 = vld [vmem:[%s9 + $0x1c] sm:$0xf]
      %v817 = vpack.c.bf16 %v808, %v808
      %v818 = vld [vmem:[%s10] sm:$0x1]
      %v820 = vlaneseq
      %v821 = vshrl.u32 %v820, 7
      %v822 = vsub.s32 0, %v821
      %v823 = vrot.slane %v818, %v822
      %v833 = vunpack.c.l.b16 %v809
      %v834 = vunpack.c.l.b16 %v810
      %v835 = vunpack.c.l.b16 %v811
      %v836 = vunpack.c.l.b16 %v812
      %v837 = vunpack.c.l.b16 %v813
      %v838 = vunpack.c.l.b16 %v814
      %v839 = vunpack.c.l.b16 %v815
      %v840 = vunpack.c.l.b16 %v816
      %v841 = vpack.c.b16 %v834, %v833
      %v842 = vpack.c.b16 %v836, %v835
      %v843 = vpack.c.b16 %v838, %v837
      %v844 = vpack.c.b16 %v840, %v839
      %v850 = vsel %vm583, %v817, 0
      %852 = vmatprep.subr.bf16.mxu0 0
      %853 = vmatpush1.bf16.msra.mxu0 0
      %854 = vmatprep.subr.bf16.mxu0 0
      %855 = vmatpush1.bf16.msra.mxu0 0
      %856 = vmatprep.subr.bf16.mxu0 0
      %857 = vmatpush1.bf16.msra.mxu0 0
      %858 = vmatprep.subr.bf16.mxu0 0
      %859 = vmatpush1.bf16.msra.mxu0 0
      %860 = vmatprep.subr.bf16.mxu0 0
      %861 = vmatpush1.bf16.msra.mxu0 %v844
      %862 = vmatprep.subr.bf16.mxu0 0
      %863 = vmatpush1.bf16.msra.mxu0 %v843
      %864 = vmatprep.subr.bf16.mxu0 0
      %865 = vmatpush1.bf16.msra.mxu0 %v842
      %866 = vmatprep.subr.bf16.mxu0 0
      %867 = vmatpush1.bf16.msra.mxu0 %v841
      %868 = vmatprep.subr.bf16.mxu0 0
      %869 = vmatpush2.bf16.msra.mxu0 0
      %870 = vmatprep.subr.bf16.mxu0 0
      %871 = vmatpush2.bf16.msra.mxu0 0
      %872 = vmatprep.subr.bf16.mxu0 0
      %873 = vmatpush2.bf16.msra.mxu0 0
      %874 = vmatprep.subr.bf16.mxu0 0
      %875 = vmatpush2.bf16.msra.mxu0 0
      %876 = vmatprep.subr.bf16.mxu0 0
      %877 = vmatpush2.bf16.msra.mxu0 0
      %878 = vmatprep.subr.bf16.mxu0 0
      %879 = vmatpush2.bf16.msra.mxu0 0
      %880 = vmatprep.subr.bf16.mxu0 0
      %881 = vmatpush2.bf16.msra.mxu0 0
      %882 = vmatprep.subr.bf16.mxu0 0
      %883 = vmatpush2.bf16.msra.mxu0 0
      %884 = vmatprep.mubr.bf16.mxu0 0
      %885 = vmatmul.mubr.bf16.gmra.mxu0 %v850
      %v886 = vpop.f32.mrf.mxu0
      %v887 = vadd.f32 %v823, %v886
      %v888 = vpop.f32.mrf.mxu0
      %v889 = vpop.f32.mrf.mxu0
      %v890 = vpop.f32.mrf.mxu0
      %891 = vdwg.mxu0
      %v892 = vsub.f32 1.0, %v429
      %v893 = vld [vmem:[%s11] sm:$0x1]
      %895 = vset.pattern.permute.xlu0 1
      %896 = vperm.xlu0 %895, %v892
      %v897 = vpop.permute.xlu0 %896
      %v899 = vmul.f32 %v897, %v893
      %v900 = vld [vmem:[%s11 + $0x1] sm:$0x1]
      %902 = vset.pattern.permute.xlu0 1
      %903 = vperm.xlu0 %902, %v429
      %v904 = vpop.permute.xlu0 %903
      %v906 = vmul.f32 %v904, %v900
      %v907 = vadd.f32 %v899, %v906
      %909 = vrot.lane.b32.xlu0 %v907, 2
      %v910 = vpop.permute.xlu0 %909
      %v912 = vadd.f32 %v887, %v910
      %914 = vrot.lane.b32.xlu0 %v728, 127
      %v915 = vpop.permute.xlu0 %914
      %v917 = vrot.slane %v915, 7
      %919 = vrot.lane.b32.xlu0 %v917, 1
      %v920 = vpop.permute.xlu0 %919
      %v922 = vsub.f32 %v728, %v920
      %v923 = vand.u32 2147483647, %v922
      %v924 = vsub.f32 1.0, %v722
      %v925 = vmul.f32 %v923, %v924
      %927 = vrot.lane.b32.xlu0 %v925, 1
      %v928 = vpop.permute.xlu0 %927
      %vm930 = vcmask 7168
      %v931 = vsel %vm930, %v915, %v725
      %vm932 = vcmask 15360
      %v933 = vsel %vm932, %v931, %v928
      %vm934 = vcmask 23552
      %v935 = vsel %vm934, %v933, 0.0
      %v936 = vrot.slane %v935, 4
      %v937 = vadd.f32 %v935, %v936
      %v938 = vrot.slane %v937, 2
      %v939 = vadd.f32 %v937, %v938
      %v940 = vrot.slane %v939, 1
      %v941 = vadd.f32 %v939, %v940
      %v942 = vadd.f32 %v941, 1e-08
      %944 = vrot.lane.b32.xlu0 %v942, 127
      %v945 = vpop.permute.xlu0 %944
      %v947 = vrcp.pop %v945
      %v948 = vmul.f32 %v941, %v947
      %v949 = vsub.f32 %v948, 0.5
      %v950 = vand.u32 2147483647, %v949
      %v951 = vsub.f32 %v941, 1.0
      %v952 = vadd.f32 %v951, 1e-08
      %954 = vrot.lane.b32.xlu0 %v952, 1
      %v955 = vpop.permute.xlu0 %954
      %v957 = vrcp.pop %v955
      %v958 = vmul.f32 %v941, %v957
      %959 = vrot.lane.b32.xlu0 %v728, 1
      %v960 = vpop.permute.xlu0 %959
      %963 = vrot.lane.b32.xlu0 %v717, 2
      %v964 = vpop.permute.xlu0 %963
      %v966 = vsel %vm932, %v706, %v960
      %v967 = vsel %vm934, %v966, %v964
      %969 = vrot.lane.b32.xlu0 %v950, 4
      %v970 = vpop.permute.xlu0 %969
      %973 = vrot.lane.b32.xlu0 %v958, 3
      %v974 = vpop.permute.xlu0 %973
      %v976 = vsel %vm932, %v887, %v912
      %vm977 = vcmask 31744
      %v978 = vsel %vm977, %v976, %v970
      %vm979 = vcmask 39936
      %v980 = vsel %vm979, %v978, %v974
      %v981 = vlaneseq
      %v982 = vshrl.u32 %v981, 7
      %v983 = vsub.s32 0, %v982
      %v984 = vrot.slane %v980, %v983
      %v985 = vmul.f32 %v722, %v984
      %987 = vrot.lane.b32.xlu0 %v985, 4
      %v988 = vpop.permute.xlu0 %987
      %v990 = vsel %vm977, %v967, %v988
      %vm991 = vcmask 80896
      %v992 = vsel %vm991, %v990, 0.0
      %993 = vst [vmem:[%s425] sm:$0xff] %v992
      %p994 = scmp.lt.s32.totalorder %s23, 1
      %s995 = scalar_select %p994, %s23, 1
      %s996 = smul.addr %s995, 8
      %s997 = scalar_lea.vmem %s12, %s996
      // Predicated region
      $region69: #{invrat_forward.1} parent=67 // pred_check
        %p998 = pneg %p303
      $region70: #{invrat_forward.1} parent=67 // pred_check_branch
        %1000 = sbr.rel (%p998) target = $region72
      $region71: #{invrat_forward.1} parent=67 // pred_region
        _
      $region72: #{invrat_forward.1} parent=67 // pred_fallthru
        _
    $region68: #{invrat_forward.1} parent=5 // pred_fallthru
      _
    %p1001 = scmp.le.s32.totalorder 2, %s18
    // Predicated region
    $region73: #{invrat_forward.1} parent=5 // pred_check
      %p1002 = pneg %p1001
    $region74: #{invrat_forward.1} parent=5 // pred_check_branch
      %1004 = sbr.rel (%p1002) target = $region76
    $region75: #{invrat_forward.1} parent=5 // pred_region
      %s1005 = ssub.s32 %s18, 2
      // Predicated region
      $region77: #{invrat_forward.1} parent=75 // pred_check
        %p1006 = pneg %p309
      $region78: #{invrat_forward.1} parent=75 // pred_check_branch
        %1008 = sbr.rel (%p1006) target = $region80
      $region79: #{invrat_forward.1} parent=75 // pred_region
        %p1009 = scmp.lt.s32.totalorder %s24, 1
        %s1010 = scalar_select %p1009, %s24, 1
        %s1011 = smul.addr %s1010, 8
        %s1012 = scalar_lea.vmem %s12, %s1011
      $region80: #{invrat_forward.1} parent=75 // pred_fallthru
        _
    $region76: #{invrat_forward.1} parent=5 // pred_fallthru
      _
  $region6: #{invrat_forward.1} parent=0 // loop_footer
    %s22 = sadd.s32 1, %s18
  $region7: #{invrat_forward.1} parent=0 // loop_footer_branch
    %17 = sbr.rel target = $region3
  $region8: #{invrat_forward.1} parent=0 // loop_exit
    _

</llo_original>
